<compile_context>
chip_gen: v5e
topology: v5e:2x2
jax: 0.10.0
libtpu: 0.0.40
codegen_flags: <defaults>
</compile_context>

<pallas_src>
import jax
import jax.numpy as jnp
from jax.experimental import pallas as pl
from jax.experimental.pallas import tpu as pltpu

_MIB = 1024 * 1024


def _round_up(x, n):
    return ((x + n - 1) // n) * n


def _angle_resnet_block_kernel(a_ref, w1_ref, w2_ref, b_ref, o_ref):
    # a_ref:  (tm, C)  activation tile (residual source), stream dtype (f32/bf16)
    # w1_ref: (C, C)   linear_1 weight, (in, out) layout
    # w2_ref: (C, C)   linear_2 weight, (in, out) layout
    # b_ref:  (2, C)   row 0 = bias_1, row 1 = bias_2 (f32)
    # o_ref:  (tm, C)
    a = a_ref[...]                                   # residual (s_initial)
    mxu_dtype = w1_ref.dtype                         # f32, or bf16

    x = jnp.maximum(a, 0).astype(mxu_dtype)          # relu
    x = jnp.dot(x, w1_ref[...], preferred_element_type=jnp.float32)
    x = x + b_ref[0:1, :]                            # bias_1 (f32)
    x = jnp.maximum(x, 0.0).astype(mxu_dtype)        # relu
    x = jnp.dot(x, w2_ref[...], preferred_element_type=jnp.float32)
    x = x + b_ref[1:2, :]                            # bias_2 (f32)

    o_ref[...] = (x + a.astype(jnp.float32)).astype(o_ref.dtype)


def angle_resnet_block(a, w1, b1, w2, b2, *, tm=2048, use_bf16=False):
    """AngleResnetBlock forward on `a` of shape [..., c_hidden].

    w1, w2: PyTorch-style nn.Linear weights, shape (c_hidden, c_hidden) = (out, in).
    b1, b2: biases, shape (c_hidden,).
    tm:     target rows per grid step (sweep 1024/2048/4096 for large inputs).
    use_bf16: stream activations + output and feed the MXU in bf16 (valid on
              v5e/v6e/v7x); accumulation and the residual add remain f32, so
              only operand/IO rounding differs.  Output dtype becomes bf16.
    """
    orig_shape = a.shape
    c = orig_shape[-1]
    a2 = a.reshape(-1, c)                            # [M, C]
    m = a2.shape[0]

    # One-time (tiny) XLA transpose: PyTorch (out, in) -> MXU-friendly (in, out).
    w1_t = jnp.transpose(w1)
    w2_t = jnp.transpose(w2)
    bias = jnp.stack([b1, b2], axis=0).astype(jnp.float32)   # (2, C)

    if use_bf16:
        a2 = a2.astype(jnp.bfloat16)                 # halve activation HBM read
        w1_t = w1_t.astype(jnp.bfloat16)
        w2_t = w2_t.astype(jnp.bfloat16)
        out_dtype = jnp.bfloat16                     # halve output HBM write
    else:
        out_dtype = a.dtype

    # ---- row-tile selection -------------------------------------------------
    vmem_limit_bytes = 32 * _MIB                     # safe on v5e/v6e/v7x
    w_isz = jnp.dtype(w1_t.dtype).itemsize
    a_isz = jnp.dtype(a2.dtype).itemsize
    o_isz = jnp.dtype(out_dtype).itemsize
    # Resident (double-buffered by the pipeliner) weights + bias.
    resident = 2 * (2 * c * c * w_isz + 2 * c * 4)
    budget = max(vmem_limit_bytes - resident - 4 * _MIB, 2 * _MIB)
    per_row = 2 * c * (a_isz + o_isz)                # double-buffered in + out
    max_tm_vmem = max(8, (budget // per_row) // 8 * 8)
    # Keep >= 2 grid steps so v7x's two TensorCores both get work.
    tm_two_steps = _round_up(pl.cdiv(m, 2), 8)
    tm_eff = max(8, min(_round_up(tm, 8), max_tm_vmem, tm_two_steps))
    grid = (pl.cdiv(m, tm_eff),)                     # tail block masked by Pallas

    out = pl.pallas_call(
        _angle_resnet_block_kernel,
        out_shape=jax.ShapeDtypeStruct((m, c), out_dtype),
        grid_spec=pltpu.PrefetchScalarGridSpec(
            num_scalar_prefetch=0,
            grid=grid,
            in_specs=[
                pl.BlockSpec((tm_eff, c), lambda i: (i, 0)),   # activations
                pl.BlockSpec((c, c), lambda i: (0, 0)),        # W1^T (resident)
                pl.BlockSpec((c, c), lambda i: (0, 0)),        # W2^T (resident)
                pl.BlockSpec((2, c), lambda i: (0, 0)),        # biases
            ],
            out_specs=pl.BlockSpec((tm_eff, c), lambda i: (i, 0)),
        ),
        compiler_params=pltpu.CompilerParams(
            dimension_semantics=("parallel",),        # shards rows across TCs (v7x)
            vmem_limit_bytes=vmem_limit_bytes,
        ),
    )(a2, w1_t, w2_t, bias)

    return out.reshape(orig_shape[:-1] + (c,))


def _reference(a, w1, b1, w2, b2):
    s = a
    x = jnp.maximum(a, 0.0)
    x = x @ w1.T + b1
    x = jnp.maximum(x, 0.0)
    x = x @ w2.T + b2
    return x + s


if __name__ == "__main__":
    key = jax.random.PRNGKey(0)
    batch, seq, c_hidden = 2, 8, 32

    k_a, k_w1, k_b1, k_w2, k_b2, k_a2 = jax.random.split(key, 6)
    a = jax.random.normal(k_a, (batch, seq, c_hidden), dtype=jnp.float32)
    # nn.Linear(c_hidden, c_hidden) parameter shapes, PyTorch (out, in) layout
    w1 = jax.random.normal(k_w1, (c_hidden, c_hidden), dtype=jnp.float32) * 0.1
    b1 = jax.random.normal(k_b1, (c_hidden,), dtype=jnp.float32) * 0.1
    w2 = jax.random.normal(k_w2, (c_hidden, c_hidden), dtype=jnp.float32) * 0.1
    b2 = jax.random.normal(k_b2, (c_hidden,), dtype=jnp.float32) * 0.1

    ref = _reference(a, w1, b1, w2, b2)

    # f32 path (matches reference)
    out = jax.block_until_ready(angle_resnet_block(a, w1, b1, w2, b2))
    assert out.shape == a.shape
    assert jnp.allclose(out, ref, atol=1e-5, rtol=1e-5), "f32 mismatch vs reference"

    # ragged leading dims -> exercises the cdiv grid + masked tail-block path
    a_rag = jax.random.normal(k_a2, (3, 13, c_hidden), dtype=jnp.float32)
    out_rag = jax.block_until_ready(angle_resnet_block(a_rag, w1, b1, w2, b2))
    ref_rag = _reference(a_rag, w1, b1, w2, b2)
    assert out_rag.shape == a_rag.shape
    assert jnp.allclose(out_rag, ref_rag, atol=1e-5, rtol=1e-5), "ragged mismatch"

    # bf16 streaming path (all generations); f32 accumulate + f32 residual add,
    # but activations/output are bf16 in HBM -> loose tolerance.
    out_bf16 = jax.block_until_ready(
        angle_resnet_block(a, w1, b1, w2, b2, use_bf16=True))
    assert out_bf16.shape == a.shape
    assert jnp.allclose(out_bf16.astype(jnp.float32), ref,
                        atol=5e-2, rtol=5e-2), "bf16 mismatch"

    print("KERNEL_OK")
</pallas_src>

<mosaic_0001>
module attributes {stable_mosaic.version = 11 : i64} {
  func.func @_angle_resnet_block_kernel(%arg0: i32, %arg1: memref<8x32xf32, #tpu.memory_space<vmem>>, %arg2: memref<32x32xf32, #tpu.memory_space<vmem>>, %arg3: memref<32x32xf32, #tpu.memory_space<vmem>>, %arg4: memref<2x32xf32, #tpu.memory_space<vmem>>, %arg5: memref<8x32xf32, #tpu.memory_space<vmem>>) attributes {dimension_semantics = [#tpu.dimension_semantics<parallel>], iteration_bounds = array<i64: 2>, scalar_prefetch = 0 : i64, scratch_operands = 0 : i64, tpu.core_type = #tpu.core_type<tc>, window_params = [{transform_indices = @transform_0, window_bounds = array<i64: 8, 32>}, {pipeline_mode = #tpu.pipeline_mode<synchronous>, transform_indices = @transform_1, window_bounds = array<i64: 32, 32>}, {pipeline_mode = #tpu.pipeline_mode<synchronous>, transform_indices = @transform_2, window_bounds = array<i64: 32, 32>}, {pipeline_mode = #tpu.pipeline_mode<synchronous>, transform_indices = @transform_3, window_bounds = array<i64: 2, 32>}, {transform_indices = @transform_4, window_bounds = array<i64: 8, 32>}]} {
    %c0 = arith.constant 0 : index
    %c0_0 = arith.constant 0 : index
    %0 = vector.load %arg1[%c0, %c0_0] : memref<8x32xf32, #tpu.memory_space<vmem>>, vector<8x32xf32>
    %cst = arith.constant 0.000000e+00 : f32
    %1 = vector.broadcast %cst : f32 to vector<8x32xf32>
    %2 = arith.maximumf %0, %1 : vector<8x32xf32>
    %c0_1 = arith.constant 0 : index
    %c0_2 = arith.constant 0 : index
    %3 = vector.load %arg2[%c0_1, %c0_2] : memref<32x32xf32, #tpu.memory_space<vmem>>, vector<32x32xf32>
    %cst_3 = arith.constant dense<0.000000e+00> : vector<8x32xf32>
    %4 = tpu.matmul %2, %3, %cst_3 {dimension_numbers = #tpu.dot_dimension_numbers<[1], [0], [0], [1], [0, 0, 1, 1], [], []>} : vector<8x32xf32>, vector<32x32xf32>, vector<8x32xf32> -> vector<8x32xf32>
    %c0_4 = arith.constant 0 : index
    %c0_5 = arith.constant 0 : index
    %5 = vector.load %arg4[%c0_4, %c0_5] : memref<2x32xf32, #tpu.memory_space<vmem>>, vector<1x32xf32>
    %6 = vector.broadcast %5 : vector<1x32xf32> to vector<8x32xf32>
    %7 = arith.addf %4, %6 : vector<8x32xf32>
    %cst_6 = arith.constant 0.000000e+00 : f32
    %8 = vector.broadcast %cst_6 : f32 to vector<8x32xf32>
    %9 = arith.maximumf %7, %8 : vector<8x32xf32>
    %c0_7 = arith.constant 0 : index
    %c0_8 = arith.constant 0 : index
    %10 = vector.load %arg3[%c0_7, %c0_8] : memref<32x32xf32, #tpu.memory_space<vmem>>, vector<32x32xf32>
    %cst_9 = arith.constant dense<0.000000e+00> : vector<8x32xf32>
    %11 = tpu.matmul %9, %10, %cst_9 {dimension_numbers = #tpu.dot_dimension_numbers<[1], [0], [0], [1], [0, 0, 1, 1], [], []>} : vector<8x32xf32>, vector<32x32xf32>, vector<8x32xf32> -> vector<8x32xf32>
    %c1 = arith.constant 1 : index
    %c0_10 = arith.constant 0 : index
    %12 = vector.load %arg4[%c1, %c0_10] : memref<2x32xf32, #tpu.memory_space<vmem>>, vector<1x32xf32>
    %13 = vector.broadcast %12 : vector<1x32xf32> to vector<8x32xf32>
    %14 = arith.addf %11, %13 : vector<8x32xf32>
    %15 = arith.addf %14, %0 : vector<8x32xf32>
    %c0_11 = arith.constant 0 : index
    %c0_12 = arith.constant 0 : index
    %16 = vector.load %arg5[%c0_11, %c0_12] : memref<8x32xf32, #tpu.memory_space<vmem>>, vector<8x32xf32>
    tpu.vector_store %arg5[%c0_11, %c0_12], %15 {strides = array<i32>} : memref<8x32xf32, #tpu.memory_space<vmem>>, vector<8x32xf32>,
    return
  }
  func.func @transform_0(%arg0: i32) -> (i32, i32) {
    %c0_i32 = arith.constant 0 : i32
    %c0_i32_0 = arith.constant 0 : i32
    return %arg0, %c0_i32 : i32, i32
  }
  func.func @transform_1(%arg0: i32) -> (i32, i32) {
    %c0_i32 = arith.constant 0 : i32
    %c0_i32_0 = arith.constant 0 : i32
    %c0_i32_1 = arith.constant 0 : i32
    return %c0_i32, %c0_i32_0 : i32, i32
  }
  func.func @transform_2(%arg0: i32) -> (i32, i32) {
    %c0_i32 = arith.constant 0 : i32
    %c0_i32_0 = arith.constant 0 : i32
    %c0_i32_1 = arith.constant 0 : i32
    return %c0_i32, %c0_i32_0 : i32, i32
  }
  func.func @transform_3(%arg0: i32) -> (i32, i32) {
    %c0_i32 = arith.constant 0 : i32
    %c0_i32_0 = arith.constant 0 : i32
    %c0_i32_1 = arith.constant 0 : i32
    return %c0_i32, %c0_i32_0 : i32, i32
  }
  func.func @transform_4(%arg0: i32) -> (i32, i32) {
    %c0_i32 = arith.constant 0 : i32
    %c0_i32_0 = arith.constant 0 : i32
    return %arg0, %c0_i32 : i32, i32
  }
}

</mosaic_0001>

<llo_original>
// kernel: tpu_custom_call.1
$region0: #{tpu_custom_call.1}
  #allocation0 [shape = 'u32[]', space=smem, size = 0x4, offset = 0x4, fixed_abs, tag = 'smem constant byte address 0x4 - core index']
  #allocation1 [shape = 'u32[72,128]{1,0:T(1,128)}', space=vmem, size = 0x9000, scoped, tag = 'internal scratch']
  %s0 = inlined_call_operand.hbm [shape: f32[16,32], index: 0, kind: input, shape index: {}]
  %s1 = inlined_call_operand.hbm [shape: f32[32,32], index: 1, kind: input, shape index: {}]
  %s2 = inlined_call_operand.hbm [shape: f32[32,32], index: 2, kind: input, shape index: {}]
  %s3 = inlined_call_operand.vmem [shape: f32[2,32], index: 3, kind: input, shape index: {}]
  %s4 = inlined_call_operand.hbm [shape: f32[16,32], index: 4, kind: output, shape index: {}]
  %s5 = sld [smem:[#allocation0]]
  $region61: #{tpu_custom_call.1} parent=0
    _
  %s7 = ssub.s32 1, %s5
  %s8 = scalar_select 0, %s7, %s5
  $region1: #{tpu_custom_call.1} parent=0
    #allocation2 [shape = 'u8[8192]{0}', space=vmem, size = 0x2000, scoped, tag = 'input window, operand 0']
    #allocation3 [shape = 's32[2]{0}', space=sflag, size = 0x8, scoped, tag = 'scoped memory for tpu_custom_call.1']
    #allocation4 [shape = 's32[2]{0}', space=sflag, size = 0x8, scoped, tag = 'scoped memory for tpu_custom_call.1']
    #allocation5 [shape = 'u8[16384]{0}', space=vmem, size = 0x4000, scoped, tag = 'input window, operand 1, single buffered']
    #allocation6 [shape = 's32[1]{0}', space=sflag, size = 0x4, scoped, tag = 'scoped memory for tpu_custom_call.1']
    #allocation7 [shape = 'u8[16384]{0}', space=vmem, size = 0x4000, scoped, tag = 'input window, operand 2, single buffered']
    #allocation8 [shape = 'u8[8192]{0}', space=vmem, size = 0x2000, scoped, tag = 'output window, operand 0']
    %9 = vsyncpa [#allocation3], 0
    %s10 = scalar_lea.sflag [#allocation3], 1
    %11 = vsyncpa %s10, 0
    %12 = vsyncpa [#allocation6], 0
    %13 = vsyncpa [#allocation4], 0
    %s14 = scalar_lea.sflag [#allocation4], 1
    %15 = vsyncpa %s14, 0
    loop: start=0, step=1, limit=4
    $region2: #{tpu_custom_call.1} parent=1 // loop_pre_header
      _
    $region3: #{tpu_custom_call.1} parent=1 // loop_header
      %s17 = sphi 0, %s21
      %p18 = scmp.ge.s32.totalorder %s17, 4
      %s27 = sphi 0, %s29
      %s30 = sphi 0, %s27
      %s31 = sphi 0, %s30
      %s47 = sphi 0, %s31
      %s51 = sphi 0, %s51
      %s53 = sphi 0, %s51
      %s54 = sphi 0, %s53
      %s68 = sphi 0, %s54
      %s72 = sphi 0, %s72
      %s74 = sphi 0, %s72
      %s75 = sphi 0, %s74
      %s89 = sphi 0, %s75
      %s93 = sphi 0, %s93
      %s95 = sphi 0, %s93
      %s96 = sphi 0, %s95
      %s110 = sphi 0, %s96
      %s116 = sphi 0, %s118
      %s119 = sphi 0, %s116
      %s120 = sphi 0, %s119
      %s136 = sphi 0, %s120
    $region4: #{tpu_custom_call.1} parent=1 // loop_header_branch
      %20 = sbr.rel (%p18) target = $region8
    $region5: #{tpu_custom_call.1} parent=1 // loop_body
      %s22 = ssub.s32 %s17, 1
      %s23 = ssub.s32 %s17, 2
      %s24 = sadd.s32 %s17, 1
      %s25 = ssub.s32 %s17, %s24
      %p26 = scmp.eq.s32.totalorder %s25, 0
      %s28 = sadd.s32 %s27, 1
      %s29 = scalar_select %p26, %s27, %s28
      %p32 = pneg %p26
      %p33 = scmp.eq.s32.totalorder %s17, 1
      %p34 = por %p32, %p33
      %p35 = scmp.ne.s32.totalorder %s27, %s30
      %p36 = scmp.eq.s32.totalorder %s17, 0
      %p37 = por %p35, %p36
      %p38 = scmp.ne.s32.totalorder %s27, %s30
      %p39 = scmp.eq.s32.totalorder %s22, 1
      %p40 = por %p38, %p39
      %p41 = scmp.ne.s32.totalorder %s30, %s31
      %p42 = scmp.eq.s32.totalorder %s22, 0
      %p43 = por %p41, %p42
      %p44 = scmp.ne.s32.totalorder %s30, %s31
      %p45 = scmp.eq.s32.totalorder %s23, 1
      %p46 = por %p44, %p45
      %p48 = scmp.ne.s32.totalorder %s31, %s47
      %p49 = scmp.eq.s32.totalorder %s23, 0
      %p50 = por %p48, %p49
      %s52 = sadd.s32 %s51, 1
      %p55 = scmp.eq.s32.totalorder %s17, 1
      %p56 = scmp.ne.s32.totalorder %s51, %s53
      %p57 = scmp.eq.s32.totalorder %s17, 0
      %p58 = por %p56, %p57
      %p59 = scmp.ne.s32.totalorder %s51, %s53
      %p60 = scmp.eq.s32.totalorder %s22, 1
      %p61 = por %p59, %p60
      %p62 = scmp.ne.s32.totalorder %s53, %s54
      %p63 = scmp.eq.s32.totalorder %s22, 0
      %p64 = por %p62, %p63
      %p65 = scmp.ne.s32.totalorder %s53, %s54
      %p66 = scmp.eq.s32.totalorder %s23, 1
      %p67 = por %p65, %p66
      %p69 = scmp.ne.s32.totalorder %s54, %s68
      %p70 = scmp.eq.s32.totalorder %s23, 0
      %p71 = por %p69, %p70
      %s73 = sadd.s32 %s72, 1
      %p76 = scmp.eq.s32.totalorder %s17, 1
      %p77 = scmp.ne.s32.totalorder %s72, %s74
      %p78 = scmp.eq.s32.totalorder %s17, 0
      %p79 = por %p77, %p78
      %p80 = scmp.ne.s32.totalorder %s72, %s74
      %p81 = scmp.eq.s32.totalorder %s22, 1
      %p82 = por %p80, %p81
      %p83 = scmp.ne.s32.totalorder %s74, %s75
      %p84 = scmp.eq.s32.totalorder %s22, 0
      %p85 = por %p83, %p84
      %p86 = scmp.ne.s32.totalorder %s74, %s75
      %p87 = scmp.eq.s32.totalorder %s23, 1
      %p88 = por %p86, %p87
      %p90 = scmp.ne.s32.totalorder %s75, %s89
      %p91 = scmp.eq.s32.totalorder %s23, 0
      %p92 = por %p90, %p91
      %s94 = sadd.s32 %s93, 1
      %p97 = scmp.eq.s32.totalorder %s17, 1
      %p98 = scmp.ne.s32.totalorder %s93, %s95
      %p99 = scmp.eq.s32.totalorder %s17, 0
      %p100 = por %p98, %p99
      %p101 = scmp.ne.s32.totalorder %s93, %s95
      %p102 = scmp.eq.s32.totalorder %s22, 1
      %p103 = por %p101, %p102
      %p104 = scmp.ne.s32.totalorder %s95, %s96
      %p105 = scmp.eq.s32.totalorder %s22, 0
      %p106 = por %p104, %p105
      %p107 = scmp.ne.s32.totalorder %s95, %s96
      %p108 = scmp.eq.s32.totalorder %s23, 1
      %p109 = por %p107, %p108
      %p111 = scmp.ne.s32.totalorder %s96, %s110
      %p112 = scmp.eq.s32.totalorder %s23, 0
      %p113 = por %p111, %p112
      %s114 = ssub.s32 %s17, %s24
      %p115 = scmp.eq.s32.totalorder %s114, 0
      %s117 = sadd.s32 %s116, 1
      %s118 = scalar_select %p115, %s116, %s117
      %p121 = pneg %p115
      %p122 = scmp.eq.s32.totalorder %s17, 1
      %p123 = por %p121, %p122
      %p124 = scmp.ne.s32.totalorder %s116, %s119
      %p125 = scmp.eq.s32.totalorder %s17, 0
      %p126 = por %p124, %p125
      %p127 = scmp.ne.s32.totalorder %s116, %s119
      %p128 = scmp.eq.s32.totalorder %s22, 1
      %p129 = por %p127, %p128
      %p130 = scmp.ne.s32.totalorder %s119, %s120
      %p131 = scmp.eq.s32.totalorder %s22, 0
      %p132 = por %p130, %p131
      %p133 = scmp.ne.s32.totalorder %s119, %s120
      %p134 = scmp.eq.s32.totalorder %s23, 1
      %p135 = por %p133, %p134
      %p137 = scmp.ne.s32.totalorder %s120, %s136
      %p138 = scmp.eq.s32.totalorder %s23, 0
      %p139 = por %p137, %p138
      %p140 = scmp.le.s32.totalorder 1, %s17
      %p141 = scmp.lt.s32.totalorder %s17, 3
      %p142 = pnand %p140, %p141
      %p143 = pneg %p142
      // Predicated region
      $region9: #{tpu_custom_call.1} parent=5 // pred_check
        _
      $region10: #{tpu_custom_call.1} parent=5 // pred_check_branch
        %145 = sbr.rel (%p142) target = $region12
      $region11: #{tpu_custom_call.1} parent=5 // pred_region
        %s146 = ssub.s32 %s17, 1
        // Predicated region
        $region13: #{tpu_custom_call.1} parent=11 // pred_check
          %p147 = pneg %p64
        $region14: #{tpu_custom_call.1} parent=11 // pred_check_branch
          %149 = sbr.rel (%p147) target = $region16
        $region15: #{tpu_custom_call.1} parent=11 // pred_region
          %151 = vsyncadd [#allocation6], 0
          %s152 = sshll.u32 %s1, 4
          %s153 = int_to_ptr.hbm [resolvable:$true] %s152
          %s154 = sshll.u32 [#allocation5], 4
          %s155 = int_to_ptr.vmem [resolvable:$true] %s154
          %160 = dma.hbm_to_vmem [thread:$0]  %s153, 512, %s155, [#allocation6], 128, 128, 8
        $region16: #{tpu_custom_call.1} parent=11 // pred_fallthru
          _
        // Predicated region
        $region17: #{tpu_custom_call.1} parent=11 // pred_check
          %p161 = pneg %p85
        $region18: #{tpu_custom_call.1} parent=11 // pred_check_branch
          %163 = sbr.rel (%p161) target = $region20
        $region19: #{tpu_custom_call.1} parent=11 // pred_region
          %165 = vsyncadd [#allocation6], 0
          %s166 = sshll.u32 %s2, 4
          %s167 = int_to_ptr.hbm [resolvable:$true] %s166
          %s168 = sshll.u32 [#allocation7], 4
          %s169 = int_to_ptr.vmem [resolvable:$true] %s168
          %174 = dma.hbm_to_vmem [thread:$0]  %s167, 512, %s169, [#allocation6], 128, 128, 8
        $region20: #{tpu_custom_call.1} parent=11 // pred_fallthru
          _
        // Predicated region
        $region21: #{tpu_custom_call.1} parent=11 // pred_check
          %p175 = pneg %p106
        $region22: #{tpu_custom_call.1} parent=11 // pred_check_branch
          %177 = sbr.rel (%p175) target = $region24
        $region23: #{tpu_custom_call.1} parent=11 // pred_region
          _
        $region24: #{tpu_custom_call.1} parent=11 // pred_fallthru
          _
      $region12: #{tpu_custom_call.1} parent=5 // pred_fallthru
        _
      %p178 = scmp.lt.s32.totalorder %s17, 2
      // Predicated region
      $region25: #{tpu_custom_call.1} parent=5 // pred_check
        %p179 = pneg %p178
      $region26: #{tpu_custom_call.1} parent=5 // pred_check_branch
        %181 = sbr.rel (%p179) target = $region28
      $region27: #{tpu_custom_call.1} parent=5 // pred_region
        // Predicated region
        $region29: #{tpu_custom_call.1} parent=27 // pred_check
          %p182 = pneg %p37
        $region30: #{tpu_custom_call.1} parent=27 // pred_check_branch
          %184 = sbr.rel (%p182) target = $region32
        $region31: #{tpu_custom_call.1} parent=27 // pred_region
          %s185 = sand.u32 %s27, 1
          %s186 = scalar_lea.sflag [#allocation3], %s185
          %s187 = sand.u32 %s27, 1
          %s188 = smul.addr %s187, 8
          %s189 = scalar_lea.vmem [#allocation2], %s188
          %191 = vsyncadd %s186, 0
          %s192 = smul.addr %s17, 8
          %s193 = scalar_lea.hbm %s0, %s192
          %s195 = sshll.u32 %s193, 4
          %s196 = int_to_ptr.hbm [resolvable:$true] %s195
          %s197 = sshll.u32 %s189, 4
          %s198 = int_to_ptr.vmem [resolvable:$true] %s197
          %200 = dma.hbm_to_vmem [thread:$0]  %s196, 128, %s198, %s186
        $region32: #{tpu_custom_call.1} parent=27 // pred_fallthru
          _
      $region28: #{tpu_custom_call.1} parent=5 // pred_fallthru
        _
      %p201 = scmp.le.s32.totalorder 1, %s17
      %p202 = scmp.lt.s32.totalorder %s17, 3
      %p203 = pnand %p201, %p202
      %p204 = pneg %p203
      // Predicated region
      $region33: #{tpu_custom_call.1} parent=5 // pred_check
        _
      $region34: #{tpu_custom_call.1} parent=5 // pred_check_branch
        %206 = sbr.rel (%p203) target = $region36
      $region35: #{tpu_custom_call.1} parent=5 // pred_region
        %s207 = ssub.s32 %s17, 1
        %s208 = sand.u32 %s30, 1
        %s209 = scalar_lea.sflag [#allocation3], %s208
        %s210 = sand.u32 %s30, 1
        %s211 = smul.addr %s210, 8
        %s212 = scalar_lea.vmem [#allocation2], %s211
        // Predicated region
        $region37: #{tpu_custom_call.1} parent=35 // pred_check
          %p213 = pneg %p43
        $region38: #{tpu_custom_call.1} parent=35 // pred_check_branch
          %215 = sbr.rel (%p213) target = $region40
        $region39: #{tpu_custom_call.1} parent=35 // pred_region
          %217 = dma.done %s209, 128
        $region40: #{tpu_custom_call.1} parent=35 // pred_fallthru
          _
        // Predicated region
        $region41: #{tpu_custom_call.1} parent=35 // pred_check
          %p218 = pneg %p64
        $region42: #{tpu_custom_call.1} parent=35 // pred_check_branch
          %220 = sbr.rel (%p218) target = $region44
        $region43: #{tpu_custom_call.1} parent=35 // pred_region
          %222 = dma.done [#allocation6], 512
        $region44: #{tpu_custom_call.1} parent=35 // pred_fallthru
          _
        // Predicated region
        $region45: #{tpu_custom_call.1} parent=35 // pred_check
          %p223 = pneg %p85
        $region46: #{tpu_custom_call.1} parent=35 // pred_check_branch
          %225 = sbr.rel (%p223) target = $region48
        $region47: #{tpu_custom_call.1} parent=35 // pred_region
          %227 = dma.done [#allocation6], 512
        $region48: #{tpu_custom_call.1} parent=35 // pred_fallthru
          _
        %s228 = sand.u32 %s30, 1
        %s229 = scalar_lea.sflag [#allocation3], %s228
        %s230 = sand.u32 %s30, 1
        %s231 = smul.addr %s230, 8
        %s232 = scalar_lea.vmem [#allocation2], %s231
        %p233 = pneg %p43
        %p234 = pneg %p40
        %p235 = pneg %p64
        %p236 = pneg %p61
        %p237 = pneg %p85
        %p238 = pneg %p82
        %p239 = pneg %p106
        %p240 = pneg %p103
        %p241 = pneg %p132
        %p242 = pneg %p129
        %s243 = sand.u32 %s119, 1
        %s244 = scalar_lea.sflag [#allocation4], %s243
        %s245 = sand.u32 %s119, 1
        %s246 = smul.addr %s245, 8
        %s247 = scalar_lea.vmem [#allocation8], %s246
        %v248 = vld [vmem:[%s212] sm:$0xff]
        %v249 = vmax.f32 %v248, 0.0
        %v250 = vld [vmem:[#allocation5] sm:$0xff]
        %v251 = vld [vmem:[#allocation5 + $0x8] sm:$0xff]
        %v252 = vld [vmem:[#allocation5 + $0x10] sm:$0xff]
        %v253 = vld [vmem:[#allocation5 + $0x18] sm:$0xff]
        %v254 = vld [vmem:[%s3] sm:$0x1]
        %v255 = vperm.slane %v254, 0
        %vm256 = vcmask 261120
        %v258 = vsel %vm256, %v249, 0
        %260 = vmatpush.msra.mxu0 0.0
        %261 = vmatpush.msra.mxu0 0.0
        %262 = vmatpush.msra.mxu0 0.0
        %263 = vmatpush.msra.mxu0 0.0
        %264 = vmatpush.msra.mxu0 0.0
        %265 = vmatpush.msra.mxu0 0.0
        %266 = vmatpush.msra.mxu0 0.0
        %267 = vmatpush.msra.mxu0 0.0
        %268 = vmatpush.msra.mxu0 0.0
        %269 = vmatpush.msra.mxu0 0.0
        %270 = vmatpush.msra.mxu0 0.0
        %271 = vmatpush.msra.mxu0 0.0
        %272 = vmatpush.msra.mxu0 %v253
        %273 = vmatpush.msra.mxu0 %v252
        %274 = vmatpush.msra.mxu0 %v251
        %275 = vmatpush.msra.mxu0 %v250
        %276 = vmatmul.f32.gmra.mxu0 %v258
        %v277 = vpop.f32.mrf.mxu0
        %v278 = vadd.f32 %v255, %v277
        %279 = vdwg.mxu0
        %v280 = vmax.f32 %v278, 0.0
        %v281 = vld [vmem:[#allocation7] sm:$0xff]
        %v282 = vld [vmem:[#allocation7 + $0x8] sm:$0xff]
        %v283 = vld [vmem:[#allocation7 + $0x10] sm:$0xff]
        %v284 = vld [vmem:[#allocation7 + $0x18] sm:$0xff]
        %v285 = vld [vmem:[%s3 + $0x1] sm:$0x1]
        %v286 = vperm.slane %v285, 0
        %v288 = vsel %vm256, %v280, 0
        %290 = vmatpush.msra.mxu0 0.0
        %291 = vmatpush.msra.mxu0 0.0
        %292 = vmatpush.msra.mxu0 0.0
        %293 = vmatpush.msra.mxu0 0.0
        %294 = vmatpush.msra.mxu0 0.0
        %295 = vmatpush.msra.mxu0 0.0
        %296 = vmatpush.msra.mxu0 0.0
        %297 = vmatpush.msra.mxu0 0.0
        %298 = vmatpush.msra.mxu0 0.0
        %299 = vmatpush.msra.mxu0 0.0
        %300 = vmatpush.msra.mxu0 0.0
        %301 = vmatpush.msra.mxu0 0.0
        %302 = vmatpush.msra.mxu0 %v284
        %303 = vmatpush.msra.mxu0 %v283
        %304 = vmatpush.msra.mxu0 %v282
        %305 = vmatpush.msra.mxu0 %v281
        %306 = vmatmul.f32.gmra.mxu0 %v288
        %v307 = vpop.f32.mrf.mxu0
        %v308 = vadd.f32 %v286, %v307
        %309 = vdwg.mxu0
        %v310 = vadd.f32 %v308, %v248
        %311 = vst.msk [vmem:[%s247] sm:$0xff] %vm256, %v310
        %s312 = sand.u32 %s119, 1
        %s313 = scalar_lea.sflag [#allocation4], %s312
        %s314 = sand.u32 %s119, 1
        %s315 = smul.addr %s314, 8
        %s316 = scalar_lea.vmem [#allocation8], %s315
        // Predicated region
        $region49: #{tpu_custom_call.1} parent=35 // pred_check
          %p317 = pneg %p129
        $region50: #{tpu_custom_call.1} parent=35 // pred_check_branch
          %319 = sbr.rel (%p317) target = $region52
        $region51: #{tpu_custom_call.1} parent=35 // pred_region
          %321 = vsyncadd %s313, 0
          %s322 = smul.addr %s22, 8
          %s323 = scalar_lea.hbm %s4, %s322
          %s325 = sshll.u32 %s316, 4
          %s326 = int_to_ptr.vmem [resolvable:$true] %s325
          %s327 = sshll.u32 %s323, 4
          %s328 = int_to_ptr.hbm [resolvable:$true] %s327
          %330 = dma.vmem_to_hbm [thread:$0]  %s326, 128, %s328, %s313
        $region52: #{tpu_custom_call.1} parent=35 // pred_fallthru
          _
      $region36: #{tpu_custom_call.1} parent=5 // pred_fallthru
        _
      %p331 = scmp.le.s32.totalorder 2, %s17
      // Predicated region
      $region53: #{tpu_custom_call.1} parent=5 // pred_check
        %p332 = pneg %p331
      $region54: #{tpu_custom_call.1} parent=5 // pred_check_branch
        %334 = sbr.rel (%p332) target = $region56
      $region55: #{tpu_custom_call.1} parent=5 // pred_region
        %s335 = ssub.s32 %s17, 2
        // Predicated region
        $region57: #{tpu_custom_call.1} parent=55 // pred_check
          %p336 = pneg %p135
        $region58: #{tpu_custom_call.1} parent=55 // pred_check_branch
          %338 = sbr.rel (%p336) target = $region60
        $region59: #{tpu_custom_call.1} parent=55 // pred_region
          %s339 = sand.u32 %s120, 1
          %s340 = scalar_lea.sflag [#allocation4], %s339
          %s341 = sand.u32 %s120, 1
          %s342 = smul.addr %s341, 8
          %s343 = scalar_lea.vmem [#allocation8], %s342
          %345 = dma.done %s340, 128
        $region60: #{tpu_custom_call.1} parent=55 // pred_fallthru
          _
      $region56: #{tpu_custom_call.1} parent=5 // pred_fallthru
        _
    $region6: #{tpu_custom_call.1} parent=1 // loop_footer
      %s21 = sadd.s32 1, %s17
    $region7: #{tpu_custom_call.1} parent=1 // loop_footer_branch
      %16 = sbr.rel target = $region3
    $region8: #{tpu_custom_call.1} parent=1 // loop_exit
      _
    %346 = vsyncpa [#allocation3], 1
    %s347 = scalar_lea.sflag [#allocation3], 1
    %348 = vsyncpa %s347, 1
    %349 = vsyncpa [#allocation6], 1
    %350 = vsyncpa [#allocation4], 1
    %s351 = scalar_lea.sflag [#allocation4], 1
    %352 = vsyncpa %s351, 1

</llo_original>
